<compile_context>
chip_gen: v7x
topology: tpu7x:2x2x1
jax: 0.10.0
libtpu: 0.0.40
codegen_flags: <defaults>
</compile_context>

<pallas_src>
import functools

import jax
import jax.numpy as jnp
from jax.experimental import pallas as pl
from jax.experimental.pallas import tpu as pltpu

LANES = 128
SUBLANES = 8
_EPS = 1e-9


def _double_gaussian_kernel(mu_ref, c_ref, x_ref, o_ref, *, mode):
    # mu/c are (2,) scalars in SMEM; x/o are (block_rows, 128) VMEM tiles.
    mu0 = mu_ref[0]
    mu1 = mu_ref[1]
    c0 = c_ref[0]  # c_k = 1 / (sqrt(2) * (eps + sigma_k)), folded in wrapper
    c1 = c_ref[1]

    x = x_ref[...].astype(jnp.float32)
    t0 = (x - mu0) * c0
    t1 = (x - mu1) * c1
    g = jnp.exp(-(t0 * t0)) + jnp.exp(-(t1 * t1))

    if mode:  # static Python branch, matches the PyTorch module
        # g >= 0  =>  g*2 - 1 >= -1, only the upper clamp is needed.
        res = jnp.minimum(g * 2.0 - 1.0, 1.0)
    else:
        # g >= 0, only the upper clamp is needed.
        res = jnp.minimum(g, 1.0)
    o_ref[...] = res.astype(o_ref.dtype)


def _as_pair(v):
    v = jnp.asarray(v, dtype=jnp.float32).reshape(-1)
    if v.shape[0] == 1:
        v = jnp.concatenate([v, v])
    return v[:2]


def double_gaussian(x, mu, sigma, *, mode=0, block_rows=4096):
    """Elementwise DoubleGaussian over an arbitrarily-shaped array (e.g. NCHW).

    block_rows=4096 -> 4096x128 f32 = 2 MiB per buffer; with double-buffered
    input + output that is 8 MiB of VMEM, under every generation's scoped
    default.  Sweep block_rows (and raise vmem_limit_bytes) when tuning v6e.
    """
    orig_shape = x.shape
    dtype = x.dtype
    n = x.size

    # Rows needed to cover the array with a lane-dense last dim of 128.
    rows = (n + LANES - 1) // LANES
    n_aligned = rows * LANES

    flat = x.reshape(-1)
    if n_aligned != n:
        # Rare path: element count not a multiple of 128. Pad only the missing
        # (<128) lanes; padded values are finite and sliced off at the end.
        flat = jnp.pad(flat, (0, n_aligned - n))
    x2d = flat.reshape(rows, LANES)

    # Block rows: split into at least two blocks (keeps both v7x TensorCores
    # busy; one extra ~0.35us step is free on v5e/v6e), multiple of 8
    # sublanes, capped at block_rows.  Pallas masks the partial last block,
    # so no whole-array padding is ever required.
    if rows <= SUBLANES:
        br = rows  # single full block (block dim == array dim is allowed)
    else:
        half = -(-rows // 2)
        br = min(block_rows, -(-half // SUBLANES) * SUBLANES)
    grid = (-(-rows // br),)

    mu_arr = _as_pair(mu)
    sigma_arr = _as_pair(sigma)
    # Fold 1/sqrt(2) and the reciprocal into a single per-Gaussian scalar.
    coef_arr = 1.0 / (jnp.sqrt(jnp.float32(2.0)) * (_EPS + sigma_arr))

    out2d = pl.pallas_call(
        functools.partial(_double_gaussian_kernel, mode=mode),
        out_shape=jax.ShapeDtypeStruct((rows, LANES), dtype),
        grid=grid,
        in_specs=[
            pl.BlockSpec(memory_space=pltpu.SMEM),  # mu   (2,)
            pl.BlockSpec(memory_space=pltpu.SMEM),  # coef (2,)
            pl.BlockSpec((br, LANES), lambda i: (i, 0)),
        ],
        out_specs=pl.BlockSpec((br, LANES), lambda i: (i, 0)),
        compiler_params=pltpu.CompilerParams(
            dimension_semantics=("parallel",),
        ),
        cost_estimate=pl.CostEstimate(
            flops=9 * n,
            transcendentals=2 * n,
            bytes_accessed=2 * dtype.itemsize * n,
        ),
    )(mu_arr, coef_arr, x2d)

    if n_aligned != n:
        return out2d.reshape(-1)[:n].reshape(orig_shape)
    return out2d.reshape(orig_shape)


def double_gaussian_ref(x, mu, sigma, *, mode=0):
    mu = _as_pair(mu)
    sigma = _as_pair(sigma)
    g = jnp.exp(-(((x - mu[0]) / (_EPS + sigma[0])) ** 2) / 2.0) + jnp.exp(
        -(((x - mu[1]) / (_EPS + sigma[1])) ** 2) / 2.0
    )
    if mode:
        return jnp.clip(g * 2.0 - 1.0, -1.0, 1.0)
    return jnp.clip(g, 0.0, 1.0)


if __name__ == "__main__":
    key = jax.random.PRNGKey(0)

    # Deterministic parameter init matching the module defaults
    # (mu=0.0, sigma=0.1 duplicated to length-2 vectors, mode=0).
    mu = jnp.array([0.0, 0.0], dtype=jnp.float32)
    sigma = jnp.array([0.1, 0.1], dtype=jnp.float32)

    # Main NCHW input, as the module is used on conv feature maps.
    x = jax.random.normal(key, (2, 4, 16, 16), dtype=jnp.float32)

    out = jax.block_until_ready(double_gaussian(x, mu, sigma, mode=0))
    ref = double_gaussian_ref(x, mu, sigma, mode=0)
    assert out.shape == x.shape and out.dtype == x.dtype
    assert jnp.allclose(out, ref, atol=1e-5, rtol=1e-5)

    # mode=1 path.
    out1 = jax.block_until_ready(double_gaussian(x, mu, sigma, mode=1))
    ref1 = double_gaussian_ref(x, mu, sigma, mode=1)
    assert jnp.allclose(out1, ref1, atol=1e-5, rtol=1e-5)

    # Partial last block (rows % br != 0, element count still a 128 multiple).
    k2 = jax.random.PRNGKey(1)
    x2 = jax.random.normal(k2, (2, 4, 20, 16), dtype=jnp.float32)
    out2 = jax.block_until_ready(double_gaussian(x2, mu, sigma, mode=0))
    ref2 = double_gaussian_ref(x2, mu, sigma, mode=0)
    assert jnp.allclose(out2, ref2, atol=1e-5, rtol=1e-5)

    # Element count not a multiple of 128 -> small lane-pad fallback path.
    k3 = jax.random.PRNGKey(2)
    x3 = jax.random.normal(k3, (3, 5, 7, 11), dtype=jnp.float32)
    out3 = jax.block_until_ready(double_gaussian(x3, mu, sigma, mode=1))
    ref3 = double_gaussian_ref(x3, mu, sigma, mode=1)
    assert out3.shape == x3.shape
    assert jnp.allclose(out3, ref3, atol=1e-5, rtol=1e-5)

    print("KERNEL_OK")
</pallas_src>

<mosaic_0001>
module attributes {stable_mosaic.version = 11 : i64} {
  func.func @_double_gaussian_kernel(%arg0: i32, %arg1: memref<2xf32, #tpu.memory_space<smem>>, %arg2: memref<2xf32, #tpu.memory_space<smem>>, %arg3: memref<8x128xf32, #tpu.memory_space<vmem>>, %arg4: memref<8x128xf32, #tpu.memory_space<vmem>>) attributes {dimension_semantics = [#tpu.dimension_semantics<parallel>], iteration_bounds = array<i64: 2>, scalar_prefetch = 0 : i64, scratch_operands = 0 : i64, tpu.core_type = #tpu.core_type<tc>, window_params = [{transform_indices = @transform_0, window_bounds = array<i64: 2>}, {transform_indices = @transform_1, window_bounds = array<i64: 2>}, {transform_indices = @transform_2, window_bounds = array<i64: 8, 128>}, {transform_indices = @transform_3, window_bounds = array<i64: 8, 128>}]} {
    %c0 = arith.constant 0 : index
    %0 = memref.load %arg1[%c0] : memref<2xf32, #tpu.memory_space<smem>>
    %c1 = arith.constant 1 : index
    %1 = memref.load %arg1[%c1] : memref<2xf32, #tpu.memory_space<smem>>
    %c0_0 = arith.constant 0 : index
    %2 = memref.load %arg2[%c0_0] : memref<2xf32, #tpu.memory_space<smem>>
    %c1_1 = arith.constant 1 : index
    %3 = memref.load %arg2[%c1_1] : memref<2xf32, #tpu.memory_space<smem>>
    %c0_2 = arith.constant 0 : index
    %c0_3 = arith.constant 0 : index
    %4 = vector.load %arg3[%c0_2, %c0_3] : memref<8x128xf32, #tpu.memory_space<vmem>>, vector<8x128xf32>
    %5 = vector.broadcast %0 : f32 to vector<8x128xf32>
    %6 = arith.subf %4, %5 : vector<8x128xf32>
    %7 = vector.broadcast %2 : f32 to vector<8x128xf32>
    %8 = arith.mulf %6, %7 : vector<8x128xf32>
    %9 = vector.broadcast %1 : f32 to vector<8x128xf32>
    %10 = arith.subf %4, %9 : vector<8x128xf32>
    %11 = vector.broadcast %3 : f32 to vector<8x128xf32>
    %12 = arith.mulf %10, %11 : vector<8x128xf32>
    %13 = arith.mulf %8, %8 : vector<8x128xf32>
    %cst = arith.constant 0.000000e+00 : f32
    %14 = vector.broadcast %cst : f32 to vector<8x128xf32>
    %15 = arith.subf %14, %13 : vector<8x128xf32>
    %16 = math.exp %15 : vector<8x128xf32>
    %17 = arith.mulf %12, %12 : vector<8x128xf32>
    %cst_4 = arith.constant 0.000000e+00 : f32
    %18 = vector.broadcast %cst_4 : f32 to vector<8x128xf32>
    %19 = arith.subf %18, %17 : vector<8x128xf32>
    %20 = math.exp %19 : vector<8x128xf32>
    %21 = arith.addf %16, %20 : vector<8x128xf32>
    %cst_5 = arith.constant 1.000000e+00 : f32
    %22 = vector.broadcast %cst_5 : f32 to vector<8x128xf32>
    %23 = arith.minimumf %21, %22 : vector<8x128xf32>
    %c0_6 = arith.constant 0 : index
    %c0_7 = arith.constant 0 : index
    %24 = vector.load %arg4[%c0_6, %c0_7] : memref<8x128xf32, #tpu.memory_space<vmem>>, vector<8x128xf32>
    tpu.vector_store %arg4[%c0_6, %c0_7], %23 {strides = array<i32>} : memref<8x128xf32, #tpu.memory_space<vmem>>, vector<8x128xf32>,
    return
  }
  func.func @transform_0(%arg0: i32) -> i32 {
    %c0_i32 = arith.constant 0 : i32
    %c0_i32_0 = arith.constant 0 : i32
    return %c0_i32 : i32
  }
  func.func @transform_1(%arg0: i32) -> i32 {
    %c0_i32 = arith.constant 0 : i32
    %c0_i32_0 = arith.constant 0 : i32
    return %c0_i32 : i32
  }
  func.func @transform_2(%arg0: i32) -> (i32, i32) {
    %c0_i32 = arith.constant 0 : i32
    %c0_i32_0 = arith.constant 0 : i32
    return %arg0, %c0_i32 : i32, i32
  }
  func.func @transform_3(%arg0: i32) -> (i32, i32) {
    %c0_i32 = arith.constant 0 : i32
    %c0_i32_0 = arith.constant 0 : i32
    return %arg0, %c0_i32 : i32, i32
  }
}

</mosaic_0001>

<llo_original>
// kernel: tpu_custom_call.1
$region0: #{tpu_custom_call.1}
  #allocation0 [shape = 'u32[]', space=smem, size = 0x4, offset = 0x4, fixed_abs, tag = 'smem constant byte address 0x4 - core index']
  #allocation1 [shape = 'u32[144,128]{1,0:T(1,128)}', space=vmem, size = 0x12000, scoped, tag = 'internal scratch']
  %s0 = inlined_call_operand.hbm [shape: f32[2], index: 0, kind: input, shape index: {}]
  %s1 = inlined_call_operand.vmem [shape: f32[2], index: 1, kind: input, shape index: {}]
  %s2 = inlined_call_operand.hbm [shape: f32[16,128], index: 2, kind: input, shape index: {}]
  %s3 = inlined_call_operand.hbm [shape: f32[16,128], index: 3, kind: output, shape index: {}]
  %s4 = sld [smem:[#allocation0]]
  $region57: #{tpu_custom_call.1} parent=0
    _
  %s6 = ssub.s32 1, %s4
  %s7 = scalar_select 0, %s6, %s4
  $region1: #{tpu_custom_call.1} parent=0
    #allocation2 [shape = 'u8[512]{0}', space=smem, size = 0x200, scoped, tag = 'input window, operand 0, single buffered']
    #allocation3 [shape = 's32[2]{0}', space=sflag, size = 0x8, scoped, tag = 'scoped memory for tpu_custom_call.1']
    #allocation4 [shape = 's32[2]{0}', space=sflag, size = 0x8, scoped, tag = 'scoped memory for tpu_custom_call.1']
    #allocation5 [shape = 's32[2]{0}', space=sflag, size = 0x8, scoped, tag = 'scoped memory for tpu_custom_call.1']
    #allocation6 [shape = 's32[2]{0}', space=sflag, size = 0x8, scoped, tag = 'scoped memory for tpu_custom_call.1']
    #allocation7 [shape = 'u8[512]{0}', space=smem, size = 0x200, scoped, tag = 'input window, operand 1, single buffered']
    #allocation8 [shape = 'u8[8192]{0}', space=vmem, size = 0x2000, scoped, tag = 'input window, operand 2']
    #allocation9 [shape = 'u8[8192]{0}', space=vmem, size = 0x2000, scoped, tag = 'output window, operand 0']
    %8 = vsyncpa [#allocation5], 0
    %9 = vsyncpa [#allocation6], 0
    %10 = vsyncpa [#allocation3], 0
    %s11 = scalar_lea.sflag [#allocation3], 1
    %12 = vsyncpa %s11, 0
    %13 = vsyncpa [#allocation4], 0
    %s14 = scalar_lea.sflag [#allocation4], 1
    %15 = vsyncpa %s14, 0
    loop: start=0, step=1, limit=4
    $region2: #{tpu_custom_call.1} parent=1 // loop_pre_header
      _
    $region3: #{tpu_custom_call.1} parent=1 // loop_header
      %s17 = sphi 0, %s21
      %p18 = scmp.ge.s32.totalorder %s17, 4
      %s25 = sphi 0, %s25
      %s27 = sphi 0, %s25
      %s28 = sphi 0, %s27
      %s42 = sphi 0, %s28
      %s46 = sphi 0, %s46
      %s48 = sphi 0, %s46
      %s49 = sphi 0, %s48
      %s63 = sphi 0, %s49
      %s69 = sphi 0, %s71
      %s72 = sphi 0, %s69
      %s73 = sphi 0, %s72
      %s89 = sphi 0, %s73
      %s95 = sphi 0, %s97
      %s98 = sphi 0, %s95
      %s99 = sphi 0, %s98
      %s115 = sphi 0, %s99
    $region4: #{tpu_custom_call.1} parent=1 // loop_header_branch
      %20 = sbr.rel (%p18) target = $region8
    $region5: #{tpu_custom_call.1} parent=1 // loop_body
      %s22 = ssub.s32 %s17, 1
      %s23 = ssub.s32 %s17, 2
      %s24 = sadd.s32 %s17, 1
      %s26 = sadd.s32 %s25, 1
      %p29 = scmp.eq.s32.totalorder %s17, 1
      %p30 = scmp.ne.s32.totalorder %s25, %s27
      %p31 = scmp.eq.s32.totalorder %s17, 0
      %p32 = por %p30, %p31
      %p33 = scmp.ne.s32.totalorder %s25, %s27
      %p34 = scmp.eq.s32.totalorder %s22, 1
      %p35 = por %p33, %p34
      %p36 = scmp.ne.s32.totalorder %s27, %s28
      %p37 = scmp.eq.s32.totalorder %s22, 0
      %p38 = por %p36, %p37
      %p39 = scmp.ne.s32.totalorder %s27, %s28
      %p40 = scmp.eq.s32.totalorder %s23, 1
      %p41 = por %p39, %p40
      %p43 = scmp.ne.s32.totalorder %s28, %s42
      %p44 = scmp.eq.s32.totalorder %s23, 0
      %p45 = por %p43, %p44
      %s47 = sadd.s32 %s46, 1
      %p50 = scmp.eq.s32.totalorder %s17, 1
      %p51 = scmp.ne.s32.totalorder %s46, %s48
      %p52 = scmp.eq.s32.totalorder %s17, 0
      %p53 = por %p51, %p52
      %p54 = scmp.ne.s32.totalorder %s46, %s48
      %p55 = scmp.eq.s32.totalorder %s22, 1
      %p56 = por %p54, %p55
      %p57 = scmp.ne.s32.totalorder %s48, %s49
      %p58 = scmp.eq.s32.totalorder %s22, 0
      %p59 = por %p57, %p58
      %p60 = scmp.ne.s32.totalorder %s48, %s49
      %p61 = scmp.eq.s32.totalorder %s23, 1
      %p62 = por %p60, %p61
      %p64 = scmp.ne.s32.totalorder %s49, %s63
      %p65 = scmp.eq.s32.totalorder %s23, 0
      %p66 = por %p64, %p65
      %s67 = ssub.s32 %s17, %s24
      %p68 = scmp.eq.s32.totalorder %s67, 0
      %s70 = sadd.s32 %s69, 1
      %s71 = scalar_select %p68, %s69, %s70
      %p74 = pneg %p68
      %p75 = scmp.eq.s32.totalorder %s17, 1
      %p76 = por %p74, %p75
      %p77 = scmp.ne.s32.totalorder %s69, %s72
      %p78 = scmp.eq.s32.totalorder %s17, 0
      %p79 = por %p77, %p78
      %p80 = scmp.ne.s32.totalorder %s69, %s72
      %p81 = scmp.eq.s32.totalorder %s22, 1
      %p82 = por %p80, %p81
      %p83 = scmp.ne.s32.totalorder %s72, %s73
      %p84 = scmp.eq.s32.totalorder %s22, 0
      %p85 = por %p83, %p84
      %p86 = scmp.ne.s32.totalorder %s72, %s73
      %p87 = scmp.eq.s32.totalorder %s23, 1
      %p88 = por %p86, %p87
      %p90 = scmp.ne.s32.totalorder %s73, %s89
      %p91 = scmp.eq.s32.totalorder %s23, 0
      %p92 = por %p90, %p91
      %s93 = ssub.s32 %s17, %s24
      %p94 = scmp.eq.s32.totalorder %s93, 0
      %s96 = sadd.s32 %s95, 1
      %s97 = scalar_select %p94, %s95, %s96
      %p100 = pneg %p94
      %p101 = scmp.eq.s32.totalorder %s17, 1
      %p102 = por %p100, %p101
      %p103 = scmp.ne.s32.totalorder %s95, %s98
      %p104 = scmp.eq.s32.totalorder %s17, 0
      %p105 = por %p103, %p104
      %p106 = scmp.ne.s32.totalorder %s95, %s98
      %p107 = scmp.eq.s32.totalorder %s22, 1
      %p108 = por %p106, %p107
      %p109 = scmp.ne.s32.totalorder %s98, %s99
      %p110 = scmp.eq.s32.totalorder %s22, 0
      %p111 = por %p109, %p110
      %p112 = scmp.ne.s32.totalorder %s98, %s99
      %p113 = scmp.eq.s32.totalorder %s23, 1
      %p114 = por %p112, %p113
      %p116 = scmp.ne.s32.totalorder %s99, %s115
      %p117 = scmp.eq.s32.totalorder %s23, 0
      %p118 = por %p116, %p117
      %p119 = scmp.le.s32.totalorder 1, %s17
      %p120 = scmp.lt.s32.totalorder %s17, 3
      %p121 = pnand %p119, %p120
      %p122 = pneg %p121
      // Predicated region
      $region9: #{tpu_custom_call.1} parent=5 // pred_check
        _
      $region10: #{tpu_custom_call.1} parent=5 // pred_check_branch
        %124 = sbr.rel (%p121) target = $region12
      $region11: #{tpu_custom_call.1} parent=5 // pred_region
        %s125 = ssub.s32 %s17, 1
        // Predicated region
        $region13: #{tpu_custom_call.1} parent=11 // pred_check
          %p126 = pneg %p38
        $region14: #{tpu_custom_call.1} parent=11 // pred_check_branch
          %128 = sbr.rel (%p126) target = $region16
        $region15: #{tpu_custom_call.1} parent=11 // pred_region
          %s130 = ssub.s32 16, 16
          %131 = vsyncadd [#allocation5], %s130
          %134 = dma.hbm_to_smem %s0, 16, [#allocation2], [#allocation5]
        $region16: #{tpu_custom_call.1} parent=11 // pred_fallthru
          _
        // Predicated region
        $region17: #{tpu_custom_call.1} parent=11 // pred_check
          %p135 = pneg %p59
        $region18: #{tpu_custom_call.1} parent=11 // pred_check_branch
          %137 = sbr.rel (%p135) target = $region20
        $region19: #{tpu_custom_call.1} parent=11 // pred_region
          %s139 = ssub.s32 16, 16
          %140 = vsyncadd [#allocation6], %s139
          %s142 = sshll.u32 %s1, 4
          %s143 = int_to_ptr.vmem [resolvable:$true] %s142
          %145 = dma.vmem_to_smem %s143, 16, [#allocation7], [#allocation6]
        $region20: #{tpu_custom_call.1} parent=11 // pred_fallthru
          _
      $region12: #{tpu_custom_call.1} parent=5 // pred_fallthru
        _
      %p146 = scmp.lt.s32.totalorder %s17, 2
      // Predicated region
      $region21: #{tpu_custom_call.1} parent=5 // pred_check
        %p147 = pneg %p146
      $region22: #{tpu_custom_call.1} parent=5 // pred_check_branch
        %149 = sbr.rel (%p147) target = $region24
      $region23: #{tpu_custom_call.1} parent=5 // pred_region
        // Predicated region
        $region25: #{tpu_custom_call.1} parent=23 // pred_check
          %p150 = pneg %p79
        $region26: #{tpu_custom_call.1} parent=23 // pred_check_branch
          %152 = sbr.rel (%p150) target = $region28
        $region27: #{tpu_custom_call.1} parent=23 // pred_region
          %s153 = sand.u32 %s69, 1
          %s154 = scalar_lea.sflag [#allocation3], %s153
          %s155 = sand.u32 %s69, 1
          %s156 = smul.addr %s155, 8
          %s157 = scalar_lea.vmem [#allocation8], %s156
          %s159 = ssub.s32 128, 128
          %160 = vsyncadd %s154, %s159
          %s161 = smul.addr %s17, 128
          %s162 = scalar_lea.hbm %s2, %s161
          %s164 = sshll.u32 %s157, 4
          %s165 = int_to_ptr.vmem [resolvable:$true] %s164
          %167 = dma.hbm_to_vmem [thread:$0]  %s162, 128, %s165, %s154
        $region28: #{tpu_custom_call.1} parent=23 // pred_fallthru
          _
      $region24: #{tpu_custom_call.1} parent=5 // pred_fallthru
        _
      %p168 = scmp.le.s32.totalorder 1, %s17
      %p169 = scmp.lt.s32.totalorder %s17, 3
      %p170 = pnand %p168, %p169
      %p171 = pneg %p170
      // Predicated region
      $region29: #{tpu_custom_call.1} parent=5 // pred_check
        _
      $region30: #{tpu_custom_call.1} parent=5 // pred_check_branch
        %173 = sbr.rel (%p170) target = $region32
      $region31: #{tpu_custom_call.1} parent=5 // pred_region
        %s174 = ssub.s32 %s17, 1
        // Predicated region
        $region33: #{tpu_custom_call.1} parent=31 // pred_check
          %p175 = pneg %p38
        $region34: #{tpu_custom_call.1} parent=31 // pred_check_branch
          %177 = sbr.rel (%p175) target = $region36
        $region35: #{tpu_custom_call.1} parent=31 // pred_region
          %178 = dma.done [#allocation5], 16
        $region36: #{tpu_custom_call.1} parent=31 // pred_fallthru
          _
        // Predicated region
        $region37: #{tpu_custom_call.1} parent=31 // pred_check
          %p179 = pneg %p59
        $region38: #{tpu_custom_call.1} parent=31 // pred_check_branch
          %181 = sbr.rel (%p179) target = $region40
        $region39: #{tpu_custom_call.1} parent=31 // pred_region
          %182 = dma.done [#allocation6], 16
        $region40: #{tpu_custom_call.1} parent=31 // pred_fallthru
          _
        %s183 = sand.u32 %s72, 1
        %s184 = scalar_lea.sflag [#allocation3], %s183
        %s185 = sand.u32 %s72, 1
        %s186 = smul.addr %s185, 8
        %s187 = scalar_lea.vmem [#allocation8], %s186
        // Predicated region
        $region41: #{tpu_custom_call.1} parent=31 // pred_check
          %p188 = pneg %p85
        $region42: #{tpu_custom_call.1} parent=31 // pred_check_branch
          %190 = sbr.rel (%p188) target = $region44
        $region43: #{tpu_custom_call.1} parent=31 // pred_region
          %191 = dma.done %s184, 128
        $region44: #{tpu_custom_call.1} parent=31 // pred_fallthru
          _
        %192 = sfence
        %p193 = pneg %p38
        %p194 = pneg %p35
        %p195 = pneg %p59
        %p196 = pneg %p56
        %s197 = sand.u32 %s72, 1
        %s198 = scalar_lea.sflag [#allocation3], %s197
        %s199 = sand.u32 %s72, 1
        %s200 = smul.addr %s199, 8
        %s201 = scalar_lea.vmem [#allocation8], %s200
        %p202 = pneg %p85
        %p203 = pneg %p82
        %p204 = pneg %p111
        %p205 = pneg %p108
        %s206 = sand.u32 %s98, 1
        %s207 = scalar_lea.sflag [#allocation4], %s206
        %s208 = sand.u32 %s98, 1
        %s209 = smul.addr %s208, 8
        %s210 = scalar_lea.vmem [#allocation9], %s209
        %s211 = sld [smem:[#allocation2]]
        %s212 = sld [smem:[#allocation2 + $0x1]]
        %s213 = sld [smem:[#allocation7]]
        %s214 = sld [smem:[#allocation7 + $0x1]]
        %v215 = vld [vmem:[%s187] sm:$0xff]
        %v216 = vstv %s211
        %v217 = vsub.f32 %v215, %v216
        %v218 = vstv %s213
        %v219 = vmul.f32 %v217, %v218
        %v220 = vstv %s212
        %v221 = vsub.f32 %v215, %v220
        %v222 = vstv %s214
        %v223 = vmul.f32 %v221, %v222
        %v224 = vmul.f32 %v219, %v219
        %v225 = vsub.f32 0.0, %v224
        %v226 = vmul.f32 %v225, 1.442695
        %v227 = vpow.pop %v226
        %v228 = vmul.f32 %v223, %v223
        %v229 = vsub.f32 0.0, %v228
        %v230 = vmul.f32 %v229, 1.442695
        %v231 = vpow.pop %v230
        %v232 = vadd.f32 %v227, %v231
        %v233 = vmin.f32 %v232, 1.0
        %234 = vst [vmem:[%s210] sm:$0xff] %v233
        %s235 = sand.u32 %s98, 1
        %s236 = scalar_lea.sflag [#allocation4], %s235
        %s237 = sand.u32 %s98, 1
        %s238 = smul.addr %s237, 8
        %s239 = scalar_lea.vmem [#allocation9], %s238
        // Predicated region
        $region45: #{tpu_custom_call.1} parent=31 // pred_check
          %p240 = pneg %p108
        $region46: #{tpu_custom_call.1} parent=31 // pred_check_branch
          %242 = sbr.rel (%p240) target = $region48
        $region47: #{tpu_custom_call.1} parent=31 // pred_region
          %s244 = ssub.s32 128, 128
          %245 = vsyncadd %s236, %s244
          %s246 = smul.addr %s22, 128
          %s247 = scalar_lea.hbm %s3, %s246
          %s249 = sshll.u32 %s239, 4
          %s250 = int_to_ptr.vmem [resolvable:$true] %s249
          %252 = dma.vmem_to_hbm [thread:$0]  %s250, 128, %s247, %s236
        $region48: #{tpu_custom_call.1} parent=31 // pred_fallthru
          _
      $region32: #{tpu_custom_call.1} parent=5 // pred_fallthru
        _
      %p253 = scmp.le.s32.totalorder 2, %s17
      // Predicated region
      $region49: #{tpu_custom_call.1} parent=5 // pred_check
        %p254 = pneg %p253
      $region50: #{tpu_custom_call.1} parent=5 // pred_check_branch
        %256 = sbr.rel (%p254) target = $region52
      $region51: #{tpu_custom_call.1} parent=5 // pred_region
        %s257 = ssub.s32 %s17, 2
        // Predicated region
        $region53: #{tpu_custom_call.1} parent=51 // pred_check
          %p258 = pneg %p114
        $region54: #{tpu_custom_call.1} parent=51 // pred_check_branch
          %260 = sbr.rel (%p258) target = $region56
        $region55: #{tpu_custom_call.1} parent=51 // pred_region
          %s261 = sand.u32 %s99, 1
          %s262 = scalar_lea.sflag [#allocation4], %s261
          %s263 = sand.u32 %s99, 1
          %s264 = smul.addr %s263, 8
          %s265 = scalar_lea.vmem [#allocation9], %s264
          %266 = dma.done %s262, 128
        $region56: #{tpu_custom_call.1} parent=51 // pred_fallthru
          _
      $region52: #{tpu_custom_call.1} parent=5 // pred_fallthru
        _
    $region6: #{tpu_custom_call.1} parent=1 // loop_footer
      %s21 = sadd.s32 1, %s17
    $region7: #{tpu_custom_call.1} parent=1 // loop_footer_branch
      %16 = sbr.rel target = $region3
    $region8: #{tpu_custom_call.1} parent=1 // loop_exit
      _
    %267 = vsyncpa [#allocation3], 1
    %s268 = scalar_lea.sflag [#allocation3], 1
    %269 = vsyncpa %s268, 1
    %270 = vsyncpa [#allocation4], 1
    %s271 = scalar_lea.sflag [#allocation4], 1
    %272 = vsyncpa %s271, 1
    %273 = vsyncpa [#allocation5], 1
    %s274 = scalar_lea.sflag [#allocation5], 1
    %275 = vsyncpa %s274, 1
    %276 = vsyncpa [#allocation6], 1
    %s277 = scalar_lea.sflag [#allocation6], 1
    %278 = vsyncpa %s277, 1

</llo_original>
